<compile_context>
chip_gen: v7x
topology: tpu7x:2x2x1
jax: 0.10.0
libtpu: 0.0.40
codegen_flags: <defaults>
</compile_context>

<pallas_src>
import functools

import jax
import jax.numpy as jnp
from jax import lax
from jax.experimental import pallas as pl
from jax.experimental.pallas import tpu as pltpu


def _cln_kernel(x_ref, gain_ref, bias_ref, o_ref, tri_ref, carry_ref,
                *, eps, tile_t, channels, bb):
    t = pl.program_id(1)

    # First time-tile of every batch block: reset the carried running sums and
    # (re)build the lower-triangular prefix block (cheap; once per batch block;
    # safe under megacore sharding of the parallel batch axis).
    @pl.when(t == 0)
    def _():
        carry_ref[...] = jnp.zeros_like(carry_ref)
        row = lax.broadcasted_iota(jnp.int32, (tile_t, tile_t), 0)
        col = lax.broadcasted_iota(jnp.int32, (tile_t, tile_t), 1)
        tri_ref[...] = (row <= col).astype(jnp.float32)   # tri[s, t] = 1 iff s <= t

    x = x_ref[...]                          # (bb, C, tile_t), input dtype
    xf = x.astype(jnp.float32)

    # Per-time-step channel reductions (stats always in f32).
    step_sum = jnp.sum(xf, axis=1)          # (bb, tile_t)
    step_pow = jnp.sum(xf * xf, axis=1)     # (bb, tile_t)

    # Fused local inclusive prefix along time: one small MXU matmul for both
    # statistics.  Precision.HIGHEST keeps the f32 cumulative sums exact.
    stacked = jnp.concatenate([step_sum, step_pow], axis=0)       # (2*bb, tile_t)
    local_cum = jnp.dot(stacked, tri_ref[...],
                        preferred_element_type=jnp.float32,
                        precision=lax.Precision.HIGHEST)          # (2*bb, tile_t)

    cum = local_cum + carry_ref[...]        # add running totals from prev tiles
    # The last prefix column already holds this tile's total — no extra XLU
    # reduction needed for the carry update.
    carry_ref[...] = cum[:, tile_t - 1:tile_t]

    cum_sum = cum[:bb, :]                   # (bb, tile_t)
    cum_pow = cum[bb:, :]                   # (bb, tile_t)

    # entry_cnt = C * (global_time_index + 1), computed in f32 (no i32 overflow).
    pos = (lax.broadcasted_iota(jnp.int32, (1, tile_t), 1)
           + (t * tile_t + 1)).astype(jnp.float32)                # (1, tile_t)
    inv_cnt = 1.0 / (pos * jnp.float32(channels))

    cum_mean = cum_sum * inv_cnt
    # Same E[x^2] - mean^2 form as the PyTorch module (no clamping), to keep the
    # original forward semantics exactly.
    cum_var = (cum_pow - 2.0 * cum_mean * cum_sum) * inv_cnt + cum_mean * cum_mean
    inv_std = lax.rsqrt(cum_var + jnp.float32(eps))               # (bb, tile_t)

    if o_ref.dtype == jnp.float32:
        gain = gain_ref[...].astype(jnp.float32)                  # (1, C, 1)
        bias = bias_ref[...].astype(jnp.float32)
        y = (xf - cum_mean[:, None, :]) * inv_std[:, None, :]
        o_ref[...] = (y * gain + bias).astype(o_ref.dtype)
    else:
        # Narrow-dtype (e.g. bf16) apply path: big (C, tile_t) work stays in the
        # input dtype; statistics remain f32 above.
        dt = o_ref.dtype
        mean_b = cum_mean[:, None, :].astype(dt)
        istd_b = inv_std[:, None, :].astype(dt)
        gain = gain_ref[...].astype(dt)
        bias = bias_ref[...].astype(dt)
        o_ref[...] = (x - mean_b) * istd_b * gain + bias


def _vmem_limit_bytes():
    """Generation-aware VMEM limit: half of physical, capped at 64 MiB."""
    cap = None
    try:
        info = pltpu.get_tpu_info()
        cap = getattr(info, "vmem_capacity_bytes", None)
    except Exception:
        cap = None
    if not cap:
        cap = 64 * 1024 * 1024     # conservative default (v7x per-TC VMEM)
    return min(64 * 1024 * 1024, cap // 2)


def _fits(bb, C, tile_t, itemsize, budget):
    io = 2 * 2 * bb * C * tile_t * itemsize    # double-buffered input + output
    tri = tile_t * tile_t * 4                  # persistent triangular scratch
    tmp = 4 * bb * C * tile_t * 4              # rough f32 temporaries / vregs
    return io + tri + tmp <= budget


def _choose_blocks(B, C, T, itemsize, budget):
    """Pick (batch_block, time_tile) that maximizes DMA size within VMEM budget."""
    if T % 128 == 0:
        tile_t = 128
        for cand in (1024, 512, 256, 128):
            if T % cand == 0 and _fits(1, C, cand, itemsize, budget):
                tile_t = cand
                break
    else:
        # TODO(synk): for very large odd T or huge C, pad T to a multiple of 128
        # (or tile C) instead of taking the whole time axis as one block.
        tile_t = T

    bb = 1
    for cand in range(min(B, 8), 0, -1):
        if B % cand != 0:
            continue
        if B >= 2 and B // cand < 2:
            # keep >= 2 batch blocks so both v7x TensorCores get work
            continue
        if _fits(cand, C, tile_t, itemsize, budget):
            bb = cand
            break
    return bb, tile_t


def cumulate_ln(x, gain, bias, eps=1e-8, tile_t=None, block_b=None):
    """x: (B, C, T); gain, bias: (1, C, 1)."""
    B, C, T = x.shape
    vmem_limit = _vmem_limit_bytes()
    budget = int(vmem_limit * 0.75)           # headroom for compiler scratch
    auto_bb, auto_tt = _choose_blocks(B, C, T, x.dtype.itemsize, budget)
    if tile_t is None:
        tile_t = auto_tt
    if block_b is None:
        block_b = auto_bb
    assert T % tile_t == 0, "tile_t must divide T"
    assert B % block_b == 0, "block_b must divide B"
    n_t = T // tile_t

    kernel = functools.partial(_cln_kernel, eps=eps, tile_t=tile_t,
                               channels=C, bb=block_b)
    return pl.pallas_call(
        kernel,
        out_shape=jax.ShapeDtypeStruct((B, C, T), x.dtype),
        grid_spec=pltpu.PrefetchScalarGridSpec(
            num_scalar_prefetch=0,
            grid=(B // block_b, n_t),
            in_specs=[
                pl.BlockSpec((block_b, C, tile_t), lambda b, t: (b, 0, t)),
                pl.BlockSpec((1, C, 1), lambda b, t: (0, 0, 0)),
                pl.BlockSpec((1, C, 1), lambda b, t: (0, 0, 0)),
            ],
            out_specs=pl.BlockSpec((block_b, C, tile_t), lambda b, t: (b, 0, t)),
            scratch_shapes=[
                pltpu.VMEM((tile_t, tile_t), jnp.float32),     # triangular block
                pltpu.VMEM((2 * block_b, 1), jnp.float32),     # sum / pow-sum carries
            ],
        ),
        compiler_params=pltpu.CompilerParams(
            dimension_semantics=("parallel", "arbitrary"),
            vmem_limit_bytes=vmem_limit,
        ),
    )(x, gain, bias)


def cumulate_ln_ref(x, gain, bias, eps=1e-8):
    """Pure-JAX reference mirroring the PyTorch forward."""
    B, C, T = x.shape
    step_sum = x.sum(axis=1)                 # (B, T)
    step_pow_sum = (x ** 2).sum(axis=1)      # (B, T)
    cum_sum = jnp.cumsum(step_sum, axis=1)
    cum_pow_sum = jnp.cumsum(step_pow_sum, axis=1)
    entry_cnt = jnp.arange(C, C * (T + 1), C, dtype=x.dtype)[None, :]
    cum_mean = cum_sum / entry_cnt
    cum_var = (cum_pow_sum - 2 * cum_mean * cum_sum) / entry_cnt + cum_mean ** 2
    cum_std = jnp.sqrt(cum_var + eps)
    y = (x - cum_mean[:, None, :]) / cum_std[:, None, :]
    return y * gain + bias


if __name__ == "__main__":
    key = jax.random.PRNGKey(0)
    k1, k2 = jax.random.split(key)

    # Small shape consistent with the module (dimension = C channels).
    B, C, T = 2, 4, 16
    x = jax.random.normal(k1, (B, C, T), dtype=jnp.float32)
    gain = jnp.ones((1, C, 1), dtype=jnp.float32)    # nn.Parameter(torch.ones)
    bias = jnp.zeros((1, C, 1), dtype=jnp.float32)   # nn.Parameter(torch.zeros)

    out = jax.block_until_ready(cumulate_ln(x, gain, bias))
    ref = cumulate_ln_ref(x, gain, bias)
    assert out.shape == (B, C, T)
    assert jnp.allclose(out, ref, atol=1e-5, rtol=1e-5), "mismatch vs reference"

    # Second check exercising batch blocking (bB=2) and the carried scan across
    # time tiles (tile_t=128 over T=256), plus non-trivial gain/bias.
    B2, C2, T2 = 4, 8, 256
    x2 = jax.random.normal(k2, (B2, C2, T2), dtype=jnp.float32)
    g2 = jax.random.normal(jax.random.PRNGKey(1), (1, C2, 1), dtype=jnp.float32)
    b2 = jax.random.normal(jax.random.PRNGKey(2), (1, C2, 1), dtype=jnp.float32)
    out2 = jax.block_until_ready(cumulate_ln(x2, g2, b2, tile_t=128))
    ref2 = cumulate_ln_ref(x2, g2, b2)
    assert jnp.allclose(out2, ref2, atol=1e-4, rtol=1e-4), "tiled mismatch vs reference"

    print("KERNEL_OK")
</pallas_src>

<mosaic_0001>
module attributes {stable_mosaic.version = 11 : i64} {
  func.func @_cln_kernel(%arg0: i32, %arg1: i32, %arg2: memref<1x4x16xf32, #tpu.memory_space<vmem>>, %arg3: memref<1x4x1xf32, #tpu.memory_space<vmem>>, %arg4: memref<1x4x1xf32, #tpu.memory_space<vmem>>, %arg5: memref<1x4x16xf32, #tpu.memory_space<vmem>>, %arg6: memref<16x16xf32, #tpu.memory_space<vmem>>, %arg7: memref<2x1xf32, #tpu.memory_space<vmem>>) attributes {dimension_semantics = [#tpu.dimension_semantics<parallel>, #tpu.dimension_semantics<arbitrary>], iteration_bounds = array<i64: 2, 1>, scalar_prefetch = 0 : i64, scratch_operands = 2 : i64, tpu.core_type = #tpu.core_type<tc>, window_params = [{transform_indices = @transform_0, window_bounds = array<i64: 1, 4, 16>}, {pipeline_mode = #tpu.pipeline_mode<synchronous>, transform_indices = @transform_1, window_bounds = array<i64: 1, 4, 1>}, {pipeline_mode = #tpu.pipeline_mode<synchronous>, transform_indices = @transform_2, window_bounds = array<i64: 1, 4, 1>}, {transform_indices = @transform_3, window_bounds = array<i64: 1, 4, 16>}]} {
    %c0_i32 = arith.constant 0 : i32
    %0 = arith.cmpi eq, %arg1, %c0_i32 : i32
    %1 = arith.extui %0 : i1 to i32
    %c0_i32_0 = arith.constant 0 : i32
    %2 = arith.cmpi ne, %1, %c0_i32_0 : i32
    scf.if %2 {
      %cst_24 = arith.constant 0.000000e+00 : f32
      %51 = vector.broadcast %cst_24 : f32 to vector<2x1xf32>
      %c0_25 = arith.constant 0 : index
      %c0_26 = arith.constant 0 : index
      %52 = vector.load %arg7[%c0_25, %c0_26] : memref<2x1xf32, #tpu.memory_space<vmem>>, vector<2x1xf32>
      tpu.vector_store %arg7[%c0_25, %c0_26], %51 {strides = array<i32>} : memref<2x1xf32, #tpu.memory_space<vmem>>, vector<2x1xf32>,
      %53 = tpu.iota {dimensions = array<i32: 0>} : vector<16x16xi32>
      %54 = tpu.iota {dimensions = array<i32: 1>} : vector<16x16xi32>
      %55 = arith.cmpi sle, %53, %54 : vector<16x16xi32>
      %56 = arith.extui %55 : vector<16x16xi1> to vector<16x16xi32>
      %57 = arith.sitofp %56 : vector<16x16xi32> to vector<16x16xf32>
      %c0_27 = arith.constant 0 : index
      %c0_28 = arith.constant 0 : index
      %58 = vector.load %arg6[%c0_27, %c0_28] : memref<16x16xf32, #tpu.memory_space<vmem>>, vector<16x16xf32>
      tpu.vector_store %arg6[%c0_27, %c0_28], %57 {strides = array<i32>} : memref<16x16xf32, #tpu.memory_space<vmem>>, vector<16x16xf32>,
    } else {
    }
    %c0 = arith.constant 0 : index
    %c0_1 = arith.constant 0 : index
    %c0_2 = arith.constant 0 : index
    %3 = vector.load %arg2[%c0, %c0_1, %c0_2] : memref<1x4x16xf32, #tpu.memory_space<vmem>>, vector<1x4x16xf32>
    %cst = arith.constant dense<0.000000e+00> : vector<1x16xf32>
    %4 = vector.multi_reduction <add>, %3, %cst [1] : vector<1x4x16xf32> to vector<1x16xf32>
    %5 = arith.mulf %3, %3 : vector<1x4x16xf32>
    %cst_3 = arith.constant dense<0.000000e+00> : vector<1x16xf32>
    %6 = vector.multi_reduction <add>, %5, %cst_3 [1] : vector<1x4x16xf32> to vector<1x16xf32>
    %7 = tpu.concatenate %4, %6 in 0 : vector<1x16xf32>, vector<1x16xf32> -> vector<2x16xf32>
    %c0_4 = arith.constant 0 : index
    %c0_5 = arith.constant 0 : index
    %8 = vector.load %arg6[%c0_4, %c0_5] : memref<16x16xf32, #tpu.memory_space<vmem>>, vector<16x16xf32>
    %cst_6 = arith.constant dense<0.000000e+00> : vector<2x16xf32>
    %9 = tpu.matmul %7, %8, %cst_6 {dimension_numbers = #tpu.dot_dimension_numbers<[1], [0], [0], [1], [0, 0, 1, 1], [], []>, precision = #tpu.contract_precision<fp32>} : vector<2x16xf32>, vector<16x16xf32>, vector<2x16xf32> -> vector<2x16xf32>
    %c0_7 = arith.constant 0 : index
    %c0_8 = arith.constant 0 : index
    %10 = vector.load %arg7[%c0_7, %c0_8] : memref<2x1xf32, #tpu.memory_space<vmem>>, vector<2x1xf32>
    %11 = vector.broadcast %10 : vector<2x1xf32> to vector<2x16xf32>
    %12 = arith.addf %9, %11 : vector<2x16xf32>
    %13 = vector.extract_strided_slice %12 {offsets = [0, 15], sizes = [2, 1], strides = [1, 1]} : vector<2x16xf32> to vector<2x1xf32>
    %c0_9 = arith.constant 0 : index
    %c0_10 = arith.constant 0 : index
    %14 = vector.load %arg7[%c0_9, %c0_10] : memref<2x1xf32, #tpu.memory_space<vmem>>, vector<2x1xf32>
    tpu.vector_store %arg7[%c0_9, %c0_10], %13 {strides = array<i32>} : memref<2x1xf32, #tpu.memory_space<vmem>>, vector<2x1xf32>,
    %15 = vector.extract_strided_slice %12 {offsets = [0, 0], sizes = [1, 16], strides = [1, 1]} : vector<2x16xf32> to vector<1x16xf32>
    %16 = vector.extract_strided_slice %12 {offsets = [1, 0], sizes = [1, 16], strides = [1, 1]} : vector<2x16xf32> to vector<1x16xf32>
    %17 = tpu.iota {dimensions = array<i32: 1>} : vector<1x16xi32>
    %c16_i32 = arith.constant 16 : i32
    %18 = arith.muli %arg1, %c16_i32 : i32
    %c1_i32 = arith.constant 1 : i32
    %19 = arith.addi %18, %c1_i32 : i32
    %20 = vector.broadcast %19 : i32 to vector<1x16xi32>
    %21 = arith.addi %17, %20 : vector<1x16xi32>
    %22 = arith.sitofp %21 : vector<1x16xi32> to vector<1x16xf32>
    %cst_11 = arith.constant 4.000000e+00 : f32
    %23 = vector.broadcast %cst_11 : f32 to vector<1x16xf32>
    %24 = arith.mulf %22, %23 : vector<1x16xf32>
    %cst_12 = arith.constant 1.000000e+00 : f32
    %25 = vector.broadcast %cst_12 : f32 to vector<1x16xf32>
    %26 = arith.divf %25, %24 : vector<1x16xf32>
    %27 = arith.mulf %15, %26 : vector<1x16xf32>
    %cst_13 = arith.constant 2.000000e+00 : f32
    %28 = vector.broadcast %cst_13 : f32 to vector<1x16xf32>
    %29 = arith.mulf %28, %27 : vector<1x16xf32>
    %30 = arith.mulf %29, %15 : vector<1x16xf32>
    %31 = arith.subf %16, %30 : vector<1x16xf32>
    %32 = arith.mulf %31, %26 : vector<1x16xf32>
    %33 = arith.mulf %27, %27 : vector<1x16xf32>
    %34 = arith.addf %32, %33 : vector<1x16xf32>
    %cst_14 = arith.constant 9.99999993E-9 : f32
    %35 = vector.broadcast %cst_14 : f32 to vector<1x16xf32>
    %36 = arith.addf %34, %35 : vector<1x16xf32>
    %37 = math.rsqrt %36 : vector<1x16xf32>
    %c0_15 = arith.constant 0 : index
    %c0_16 = arith.constant 0 : index
    %c0_17 = arith.constant 0 : index
    %38 = vector.load %arg3[%c0_15, %c0_16, %c0_17] : memref<1x4x1xf32, #tpu.memory_space<vmem>>, vector<1x4x1xf32>
    %c0_18 = arith.constant 0 : index
    %c0_19 = arith.constant 0 : index
    %c0_20 = arith.constant 0 : index
    %39 = vector.load %arg4[%c0_18, %c0_19, %c0_20] : memref<1x4x1xf32, #tpu.memory_space<vmem>>, vector<1x4x1xf32>
    %40 = vector.shape_cast %27 : vector<1x16xf32> to vector<1x1x16xf32>
    %41 = vector.broadcast %40 : vector<1x1x16xf32> to vector<1x4x16xf32>
    %42 = arith.subf %3, %41 : vector<1x4x16xf32>
    %43 = vector.shape_cast %37 : vector<1x16xf32> to vector<1x1x16xf32>
    %44 = vector.broadcast %43 : vector<1x1x16xf32> to vector<1x4x16xf32>
    %45 = arith.mulf %42, %44 : vector<1x4x16xf32>
    %46 = vector.broadcast %38 : vector<1x4x1xf32> to vector<1x4x16xf32>
    %47 = arith.mulf %45, %46 : vector<1x4x16xf32>
    %48 = vector.broadcast %39 : vector<1x4x1xf32> to vector<1x4x16xf32>
    %49 = arith.addf %47, %48 : vector<1x4x16xf32>
    %c0_21 = arith.constant 0 : index
    %c0_22 = arith.constant 0 : index
    %c0_23 = arith.constant 0 : index
    %50 = vector.load %arg5[%c0_21, %c0_22, %c0_23] : memref<1x4x16xf32, #tpu.memory_space<vmem>>, vector<1x4x16xf32>
    tpu.vector_store %arg5[%c0_21, %c0_22, %c0_23], %49 {strides = array<i32>} : memref<1x4x16xf32, #tpu.memory_space<vmem>>, vector<1x4x16xf32>,
    return
  }
  func.func @transform_0(%arg0: i32, %arg1: i32) -> (i32, i32, i32) {
    %c0_i32 = arith.constant 0 : i32
    %c0_i32_0 = arith.constant 0 : i32
    return %arg0, %c0_i32, %arg1 : i32, i32, i32
  }
  func.func @transform_1(%arg0: i32, %arg1: i32) -> (i32, i32, i32) {
    %c0_i32 = arith.constant 0 : i32
    %c0_i32_0 = arith.constant 0 : i32
    %c0_i32_1 = arith.constant 0 : i32
    %c0_i32_2 = arith.constant 0 : i32
    return %c0_i32, %c0_i32_0, %c0_i32_1 : i32, i32, i32
  }
  func.func @transform_2(%arg0: i32, %arg1: i32) -> (i32, i32, i32) {
    %c0_i32 = arith.constant 0 : i32
    %c0_i32_0 = arith.constant 0 : i32
    %c0_i32_1 = arith.constant 0 : i32
    %c0_i32_2 = arith.constant 0 : i32
    return %c0_i32, %c0_i32_0, %c0_i32_1 : i32, i32, i32
  }
  func.func @transform_3(%arg0: i32, %arg1: i32) -> (i32, i32, i32) {
    %c0_i32 = arith.constant 0 : i32
    %c0_i32_0 = arith.constant 0 : i32
    return %arg0, %c0_i32, %arg1 : i32, i32, i32
  }
}

</mosaic_0001>

<llo_original>
// kernel: tpu_custom_call.1
$region0: #{tpu_custom_call.1}
  #allocation0 [shape = 'u32[]', space=smem, size = 0x4, offset = 0x4, fixed_abs, tag = 'smem constant byte address 0x4 - core index']
  #allocation1 [shape = 'u32[144,128]{1,0:T(1,128)}', space=vmem, size = 0x12000, scoped, tag = 'internal scratch']
  #allocation2 [shape = 'f32[16,16]{1,0:T(8,128)}', space=vmem, size = 0x2000, scoped, tag = 'scratch operand']
  #allocation3 [shape = 'f32[2,1]{1,0:T(2,128)}', space=vmem, size = 0x400, scoped, tag = 'scratch operand']
  %s0 = inlined_call_operand.vmem [shape: f32[2,4,16], index: 0, kind: input, shape index: {}]
  %s1 = inlined_call_operand.vmem [shape: f32[1,4,1], index: 1, kind: input, shape index: {}]
  %s2 = inlined_call_operand.vmem [shape: f32[1,4,1], index: 2, kind: input, shape index: {}]
  %s3 = inlined_call_operand.hbm [shape: f32[2,4,16], index: 3, kind: output, shape index: {}]
  %s4 = sld [smem:[#allocation0]]
  $region49: #{tpu_custom_call.1} parent=0
    _
  %s6 = ssub.s32 1, %s4
  %s7 = scalar_select 0, %s6, %s4
  $region1: #{tpu_custom_call.1} parent=0
    #allocation4 [shape = 'u8[4096]{0}', space=vmem, size = 0x1000, scoped, tag = 'output window, operand 0']
    #allocation5 [shape = 's32[2]{0}', space=sflag, size = 0x8, scoped, tag = 'scoped memory for tpu_custom_call.1']
    %8 = vsyncpa [#allocation5], 0
    %s9 = scalar_lea.sflag [#allocation5], 1
    %10 = vsyncpa %s9, 0
    loop: start=0, step=1, limit=4
    $region2: #{tpu_custom_call.1} parent=1 // loop_pre_header
      _
    $region3: #{tpu_custom_call.1} parent=1 // loop_header
      %s12 = sphi 0, %s16
      %p13 = scmp.ge.s32.totalorder %s12, 4
      %s19 = sphi 0, %s31
      %s20 = sphi 0, %s27
      %s21 = sphi 0, %s19
      %s22 = sphi 0, %s20
      %s23 = sphi 0, %s21
      %s24 = sphi 0, %s22
      %s36 = sphi 0, %s38
      %s39 = sphi 0, %s36
      %s40 = sphi 0, %s39
      %s56 = sphi 0, %s40
      %s60 = sphi 0, %s60
      %s62 = sphi 0, %s60
      %s63 = sphi 0, %s62
      %s77 = sphi 0, %s63
      %s81 = sphi 0, %s81
      %s83 = sphi 0, %s81
      %s84 = sphi 0, %s83
      %s98 = sphi 0, %s84
      %s106 = sphi 0, %s108
      %s109 = sphi 0, %s106
      %s110 = sphi 0, %s109
      %s126 = sphi 0, %s110
    $region4: #{tpu_custom_call.1} parent=1 // loop_header_branch
      %15 = sbr.rel (%p13) target = $region8
    $region5: #{tpu_custom_call.1} parent=1 // loop_body
      %s17 = ssub.s32 %s12, 1
      %s18 = ssub.s32 %s12, 2
      %s25 = sadd.s32 1, %s20
      %p26 = scmp.ge.s32.totalorder %s25, 1
      %s27 = scalar_select %p26, 0, %s25
      %s28 = sadd.s32 1, %s19
      %s29 = scalar_select %p26, %s28, %s19
      %p30 = scmp.ge.s32.totalorder %s29, 2
      %s31 = scalar_select %p30, 0, %s29
      %s32 = ssub.s32 %s19, %s31
      %s33 = ssub.s32 %s20, %s27
      %s34 = sor.u32 %s32, %s33
      %p35 = scmp.eq.s32.totalorder %s34, 0
      %s37 = sadd.s32 %s36, 1
      %s38 = scalar_select %p35, %s36, %s37
      %p41 = pneg %p35
      %p42 = scmp.eq.s32.totalorder %s12, 1
      %p43 = por %p41, %p42
      %p44 = scmp.ne.s32.totalorder %s36, %s39
      %p45 = scmp.eq.s32.totalorder %s12, 0
      %p46 = por %p44, %p45
      %p47 = scmp.ne.s32.totalorder %s36, %s39
      %p48 = scmp.eq.s32.totalorder %s17, 1
      %p49 = por %p47, %p48
      %p50 = scmp.ne.s32.totalorder %s39, %s40
      %p51 = scmp.eq.s32.totalorder %s17, 0
      %p52 = por %p50, %p51
      %p53 = scmp.ne.s32.totalorder %s39, %s40
      %p54 = scmp.eq.s32.totalorder %s18, 1
      %p55 = por %p53, %p54
      %p57 = scmp.ne.s32.totalorder %s40, %s56
      %p58 = scmp.eq.s32.totalorder %s18, 0
      %p59 = por %p57, %p58
      %s61 = sadd.s32 %s60, 1
      %p64 = scmp.eq.s32.totalorder %s12, 1
      %p65 = scmp.ne.s32.totalorder %s60, %s62
      %p66 = scmp.eq.s32.totalorder %s12, 0
      %p67 = por %p65, %p66
      %p68 = scmp.ne.s32.totalorder %s60, %s62
      %p69 = scmp.eq.s32.totalorder %s17, 1
      %p70 = por %p68, %p69
      %p71 = scmp.ne.s32.totalorder %s62, %s63
      %p72 = scmp.eq.s32.totalorder %s17, 0
      %p73 = por %p71, %p72
      %p74 = scmp.ne.s32.totalorder %s62, %s63
      %p75 = scmp.eq.s32.totalorder %s18, 1
      %p76 = por %p74, %p75
      %p78 = scmp.ne.s32.totalorder %s63, %s77
      %p79 = scmp.eq.s32.totalorder %s18, 0
      %p80 = por %p78, %p79
      %s82 = sadd.s32 %s81, 1
      %p85 = scmp.eq.s32.totalorder %s12, 1
      %p86 = scmp.ne.s32.totalorder %s81, %s83
      %p87 = scmp.eq.s32.totalorder %s12, 0
      %p88 = por %p86, %p87
      %p89 = scmp.ne.s32.totalorder %s81, %s83
      %p90 = scmp.eq.s32.totalorder %s17, 1
      %p91 = por %p89, %p90
      %p92 = scmp.ne.s32.totalorder %s83, %s84
      %p93 = scmp.eq.s32.totalorder %s17, 0
      %p94 = por %p92, %p93
      %p95 = scmp.ne.s32.totalorder %s83, %s84
      %p96 = scmp.eq.s32.totalorder %s18, 1
      %p97 = por %p95, %p96
      %p99 = scmp.ne.s32.totalorder %s84, %s98
      %p100 = scmp.eq.s32.totalorder %s18, 0
      %p101 = por %p99, %p100
      %s102 = ssub.s32 %s19, %s31
      %s103 = ssub.s32 %s20, %s27
      %s104 = sor.u32 %s102, %s103
      %p105 = scmp.eq.s32.totalorder %s104, 0
      %s107 = sadd.s32 %s106, 1
      %s108 = scalar_select %p105, %s106, %s107
      %p111 = pneg %p105
      %p112 = scmp.eq.s32.totalorder %s12, 1
      %p113 = por %p111, %p112
      %p114 = scmp.ne.s32.totalorder %s106, %s109
      %p115 = scmp.eq.s32.totalorder %s12, 0
      %p116 = por %p114, %p115
      %p117 = scmp.ne.s32.totalorder %s106, %s109
      %p118 = scmp.eq.s32.totalorder %s17, 1
      %p119 = por %p117, %p118
      %p120 = scmp.ne.s32.totalorder %s109, %s110
      %p121 = scmp.eq.s32.totalorder %s17, 0
      %p122 = por %p120, %p121
      %p123 = scmp.ne.s32.totalorder %s109, %s110
      %p124 = scmp.eq.s32.totalorder %s18, 1
      %p125 = por %p123, %p124
      %p127 = scmp.ne.s32.totalorder %s110, %s126
      %p128 = scmp.eq.s32.totalorder %s18, 0
      %p129 = por %p127, %p128
      %p130 = scmp.le.s32.totalorder 1, %s12
      %p131 = scmp.lt.s32.totalorder %s12, 3
      %p132 = pnand %p130, %p131
      %p133 = pneg %p132
      // Predicated region
      $region9: #{tpu_custom_call.1} parent=5 // pred_check
        _
      $region10: #{tpu_custom_call.1} parent=5 // pred_check_branch
        %135 = sbr.rel (%p132) target = $region12
      $region11: #{tpu_custom_call.1} parent=5 // pred_region
        %s136 = ssub.s32 %s12, 1
        // Predicated region
        $region13: #{tpu_custom_call.1} parent=11 // pred_check
          %p137 = pneg %p73
        $region14: #{tpu_custom_call.1} parent=11 // pred_check_branch
          %139 = sbr.rel (%p137) target = $region16
        $region15: #{tpu_custom_call.1} parent=11 // pred_region
          _
        $region16: #{tpu_custom_call.1} parent=11 // pred_fallthru
          _
        // Predicated region
        $region17: #{tpu_custom_call.1} parent=11 // pred_check
          %p140 = pneg %p94
        $region18: #{tpu_custom_call.1} parent=11 // pred_check_branch
          %142 = sbr.rel (%p140) target = $region20
        $region19: #{tpu_custom_call.1} parent=11 // pred_region
          _
        $region20: #{tpu_custom_call.1} parent=11 // pred_fallthru
          _
      $region12: #{tpu_custom_call.1} parent=5 // pred_fallthru
        _
      %p143 = scmp.lt.s32.totalorder %s12, 2
      // Predicated region
      $region21: #{tpu_custom_call.1} parent=5 // pred_check
        %p144 = pneg %p143
      $region22: #{tpu_custom_call.1} parent=5 // pred_check_branch
        %146 = sbr.rel (%p144) target = $region24
      $region23: #{tpu_custom_call.1} parent=5 // pred_region
        // Predicated region
        $region25: #{tpu_custom_call.1} parent=23 // pred_check
          %p147 = pneg %p46
        $region26: #{tpu_custom_call.1} parent=23 // pred_check_branch
          %149 = sbr.rel (%p147) target = $region28
        $region27: #{tpu_custom_call.1} parent=23 // pred_region
          %p150 = scmp.lt.s32.totalorder %s19, 1
          %s151 = scalar_select %p150, %s19, 1
          %p152 = scmp.lt.s32.totalorder %s20, 0
          %s153 = scalar_select %p152, %s20, 0
          %s154 = sadd.s32 %s153, %s151
          %s155 = smul.addr %s154, 4
          %s156 = scalar_lea.vmem %s0, %s155
        $region28: #{tpu_custom_call.1} parent=23 // pred_fallthru
          _
      $region24: #{tpu_custom_call.1} parent=5 // pred_fallthru
        _
      %p157 = scmp.le.s32.totalorder 1, %s12
      %p158 = scmp.lt.s32.totalorder %s12, 3
      %p159 = pnand %p157, %p158
      %p160 = pneg %p159
      // Predicated region
      $region29: #{tpu_custom_call.1} parent=5 // pred_check
        _
      $region30: #{tpu_custom_call.1} parent=5 // pred_check_branch
        %162 = sbr.rel (%p159) target = $region32
      $region31: #{tpu_custom_call.1} parent=5 // pred_region
        %s163 = ssub.s32 %s12, 1
        %p164 = scmp.lt.s32.totalorder %s21, 1
        %s165 = scalar_select %p164, %s21, 1
        %p166 = scmp.lt.s32.totalorder %s22, 0
        %s167 = scalar_select %p166, %s22, 0
        %s168 = sadd.s32 %s167, %s165
        %s169 = smul.addr %s168, 4
        %s170 = scalar_lea.vmem %s0, %s169
        %p171 = pneg %p52
        %p172 = pneg %p49
        %p173 = pneg %p73
        %p174 = pneg %p70
        %p175 = pneg %p94
        %p176 = pneg %p91
        %p177 = pneg %p122
        %p178 = pneg %p119
        %s179 = sand.u32 %s109, 1
        %s180 = scalar_lea.sflag [#allocation5], %s179
        %s181 = sand.u32 %s109, 1
        %s182 = smul.addr %s181, 4
        %s183 = scalar_lea.vmem [#allocation4], %s182
        %p184 = scmp.lt.s32.totalorder %s21, 1
        %s185 = scalar_select %p184, %s21, 1
        %p186 = scmp.lt.s32.totalorder %s22, 0
        %s187 = scalar_select %p186, %s22, 0
        %s188 = sadd.s32 %s187, %s185
        %s189 = smul.addr %s188, 4
        %s190 = scalar_lea.vmem %s0, %s189
        %p191 = scmp.eq.s32.totalorder %s22, 0
        // Predicated region
        $region33: #{tpu_custom_call.1} parent=31 // pred_check
          %p192 = pneg %p191
        $region34: #{tpu_custom_call.1} parent=31 // pred_check_branch
          %194 = sbr.rel (%p192) target = $region36
        $region35: #{tpu_custom_call.1} parent=31 // pred_region
          %vm195 = vcmask 1024
          %196 = vst.msk [vmem:[#allocation3] sm:$0x3] %vm195, 0.0
          %v197 = vlaneseq
          %v198 = vshrl.u32 %v197, 7
          %v199 = vadd.s32 %v198, 8
          %v200 = vlaneseq
          %v201 = vand.u32 %v200, 127
          %vm202 = vcmp.le.s32.totalorder %v198, %v201
          %vm203 = vcmp.le.s32.totalorder %v199, %v201
          %v204 = vsel %vm202, 1, 0
          %v205 = vsel %vm203, 1, 0
          %v206 = vcvt.s32.f32 %v204
          %v207 = vcvt.s32.f32 %v205
          %vm208 = vcmask 130048
          %209 = vst.msk [vmem:[#allocation2] sm:$0xff] %vm208, %v206
          %210 = vst.msk [vmem:[#allocation2 + $0x8] sm:$0xff] %vm208, %v207
        $region36: #{tpu_custom_call.1} parent=31 // pred_fallthru
          _
        %v211 = vld [vmem:[%s190] sm:$0xf]
        %vm212 = vcmask 125952
        %v213 = vsel %vm212, %v211, 0.0
        %v214 = vrot.slane %v213, 4
        %v215 = vadd.f32 %v213, %v214
        %v216 = vrot.slane %v215, 2
        %v217 = vadd.f32 %v215, %v216
        %v218 = vrot.slane %v217, 1
        %v219 = vadd.f32 %v217, %v218
        %v220 = vmul.f32 %v211, %v211
        %v221 = vsel %vm212, %v220, 0.0
        %v222 = vrot.slane %v221, 4
        %v223 = vadd.f32 %v221, %v222
        %v224 = vrot.slane %v223, 2
        %v225 = vadd.f32 %v223, %v224
        %v226 = vrot.slane %v225, 1
        %v227 = vadd.f32 %v225, %v226
        %vm228 = vcmask 1040384
        %v229 = vsel %vm228, %v219, %v227
        %v230 = vld [vmem:[#allocation2] sm:$0xff]
        %v231 = vld [vmem:[#allocation2 + $0x8] sm:$0xff]
        %v232 = vld [vmem:[#allocation3] sm:$0x3]
        %234 = vset.pattern.permute.xlu0 0
        %235 = vperm.xlu0 %234, %v232
        %v236 = vpop.permute.xlu0 %235
        %vm238 = vcmask 130048
        %v240 = vsel %vm238, %v229, 0
        %242 = vmatprep.subr.mxu0 0.0
        %v243 = vand.u32 %v230, 4294901760
        %244 = vmatpush1.msra.mxu0 %v243
        %245 = vmatprep.subr.mxu0 0.0
        %v246 = vand.u32 %v231, 4294901760
        %247 = vmatpush1.msra.mxu0 %v246
        %248 = vmatprep.subr.mxu0 0.0
        %249 = vmatpush1.msra.mxu0 0.0
        %250 = vmatprep.subr.mxu0 0.0
        %251 = vmatpush1.msra.mxu0 0.0
        %252 = vmatprep.subr.mxu0 0.0
        %253 = vmatpush1.msra.mxu0 0.0
        %254 = vmatprep.subr.mxu0 0.0
        %255 = vmatpush1.msra.mxu0 0.0
        %256 = vmatprep.subr.mxu0 0.0
        %257 = vmatpush1.msra.mxu0 0.0
        %258 = vmatprep.subr.mxu0 0.0
        %259 = vmatpush1.msra.mxu0 0.0
        %260 = vmatprep.subr.mxu0 0.0
        %261 = vmatpush1.msra.mxu0 0.0
        %262 = vmatprep.subr.mxu0 0.0
        %263 = vmatpush1.msra.mxu0 0.0
        %264 = vmatprep.subr.mxu0 0.0
        %265 = vmatpush1.msra.mxu0 0.0
        %266 = vmatprep.subr.mxu0 0.0
        %267 = vmatpush1.msra.mxu0 0.0
        %268 = vmatprep.subr.mxu0 0.0
        %269 = vmatpush1.msra.mxu0 0.0
        %270 = vmatprep.subr.mxu0 0.0
        %271 = vmatpush1.msra.mxu0 0.0
        %272 = vmatprep.subr.mxu0 0.0
        %273 = vmatpush1.msra.mxu0 0.0
        %274 = vmatprep.subr.mxu0 0.0
        %275 = vmatpush1.msra.mxu0 0.0
        %276 = vmatprep.subr.mxu0 0.0
        %277 = vmatpush1.msra.mxu0 0.0
        %278 = vmatprep.subr.mxu0 0.0
        %279 = vmatpush1.msra.mxu0 0.0
        %280 = vmatprep.subr.mxu0 0.0
        %281 = vmatpush1.msra.mxu0 0.0
        %282 = vmatprep.subr.mxu0 0.0
        %283 = vmatpush1.msra.mxu0 0.0
        %284 = vmatprep.subr.mxu0 0.0
        %285 = vmatpush1.msra.mxu0 0.0
        %286 = vmatprep.subr.mxu0 0.0
        %287 = vmatpush1.msra.mxu0 0.0
        %288 = vmatprep.subr.mxu0 0.0
        %289 = vmatpush1.msra.mxu0 0.0
        %290 = vmatprep.subr.mxu0 0.0
        %291 = vmatpush1.msra.mxu0 0.0
        %292 = vmatprep.subr.mxu0 0.0
        %293 = vmatpush1.msra.mxu0 0.0
        %294 = vmatprep.subr.mxu0 0.0
        %295 = vmatpush1.msra.mxu0 0.0
        %296 = vmatprep.subr.mxu0 0.0
        %297 = vmatpush1.msra.mxu0 0.0
        %298 = vmatprep.subr.mxu0 0.0
        %299 = vmatpush1.msra.mxu0 0.0
        %300 = vmatprep.subr.mxu0 0.0
        %301 = vmatpush1.msra.mxu0 0.0
        %302 = vmatprep.subr.mxu0 0.0
        %303 = vmatpush1.msra.mxu0 0.0
        %304 = vmatprep.subr.mxu0 0.0
        %305 = vmatpush1.msra.mxu0 0.0
        %306 = vmatprep.subr.mxu0 0.0
        %307 = vmatpush1.msra.mxu0 0.0
        %308 = vmatprep.mubr.f32.mxu0 0.0
        %v309 = vand.u32 %v240, 4294901760
        %v310 = vsub.f32 %v240, %v309
        %v311 = vand.u32 %v310, 4294901760
        %v312 = vsub.f32 %v310, %v311
        %v313 = vand.u32 %v312, 4294901760
        %314 = vmatmul.mubr.f32.gmra.mrb[0].mxu0 %v313
        %v315 = vpop.f32.mrb[0].mxu0
        %v316 = vadd.f32 %v236, %v315
        %v317 = vpop.f32.mrb[0].mxu0
        %318 = vdwg.mxu0
        %319 = vmatprep.subr.mxu0 0.0
        %v320 = vand.u32 %v230, 4294901760
        %v321 = vsub.f32 %v230, %v320
        %v322 = vand.u32 %v321, 4294901760
        %v323 = vsub.f32 %v321, %v322
        %v324 = vand.u32 %v323, 4294901760
        %325 = vmatpush1.msra.mxu0 %v324
        %326 = vmatprep.subr.mxu0 0.0
        %v327 = vand.u32 %v231, 4294901760
        %v328 = vsub.f32 %v231, %v327
        %v329 = vand.u32 %v328, 4294901760
        %v330 = vsub.f32 %v328, %v329
        %v331 = vand.u32 %v330, 4294901760
        %332 = vmatpush1.msra.mxu0 %v331
        %333 = vmatprep.subr.mxu0 0.0
        %334 = vmatpush1.msra.mxu0 0.0
        %335 = vmatprep.subr.mxu0 0.0
        %336 = vmatpush1.msra.mxu0 0.0
        %337 = vmatprep.subr.mxu0 0.0
        %338 = vmatpush1.msra.mxu0 0.0
        %339 = vmatprep.subr.mxu0 0.0
        %340 = vmatpush1.msra.mxu0 0.0
        %341 = vmatprep.subr.mxu0 0.0
        %342 = vmatpush1.msra.mxu0 0.0
        %343 = vmatprep.subr.mxu0 0.0
        %344 = vmatpush1.msra.mxu0 0.0
        %345 = vmatprep.subr.mxu0 0.0
        %346 = vmatpush1.msra.mxu0 0.0
        %347 = vmatprep.subr.mxu0 0.0
        %348 = vmatpush1.msra.mxu0 0.0
        %349 = vmatprep.subr.mxu0 0.0
        %350 = vmatpush1.msra.mxu0 0.0
        %351 = vmatprep.subr.mxu0 0.0
        %352 = vmatpush1.msra.mxu0 0.0
        %353 = vmatprep.subr.mxu0 0.0
        %354 = vmatpush1.msra.mxu0 0.0
        %355 = vmatprep.subr.mxu0 0.0
        %356 = vmatpush1.msra.mxu0 0.0
        %357 = vmatprep.subr.mxu0 0.0
        %358 = vmatpush1.msra.mxu0 0.0
        %359 = vmatprep.subr.mxu0 0.0
        %360 = vmatpush1.msra.mxu0 0.0
        %361 = vmatprep.subr.mxu0 0.0
        %362 = vmatpush1.msra.mxu0 0.0
        %363 = vmatprep.subr.mxu0 0.0
        %364 = vmatpush1.msra.mxu0 0.0
        %365 = vmatprep.subr.mxu0 0.0
        %366 = vmatpush1.msra.mxu0 0.0
        %367 = vmatprep.subr.mxu0 0.0
        %368 = vmatpush1.msra.mxu0 0.0
        %369 = vmatprep.subr.mxu0 0.0
        %370 = vmatpush1.msra.mxu0 0.0
        %371 = vmatprep.subr.mxu0 0.0
        %372 = vmatpush1.msra.mxu0 0.0
        %373 = vmatprep.subr.mxu0 0.0
        %374 = vmatpush1.msra.mxu0 0.0
        %375 = vmatprep.subr.mxu0 0.0
        %376 = vmatpush1.msra.mxu0 0.0
        %377 = vmatprep.subr.mxu0 0.0
        %378 = vmatpush1.msra.mxu0 0.0
        %379 = vmatprep.subr.mxu0 0.0
        %380 = vmatpush1.msra.mxu0 0.0
        %381 = vmatprep.subr.mxu0 0.0
        %382 = vmatpush1.msra.mxu0 0.0
        %383 = vmatprep.subr.mxu0 0.0
        %384 = vmatpush1.msra.mxu0 0.0
        %385 = vmatprep.subr.mxu0 0.0
        %386 = vmatpush1.msra.mxu0 0.0
        %387 = vmatprep.subr.mxu0 0.0
        %388 = vmatpush1.msra.mxu0 0.0
        %389 = vmatprep.subr.mxu0 0.0
        %390 = vmatpush1.msra.mxu0 0.0
        %391 = vmatprep.subr.mxu0 0.0
        %392 = vmatpush1.msra.mxu0 0.0
        %393 = vmatprep.mubr.f32.mxu0 0.0
        %v394 = vand.u32 %v240, 4294901760
        %395 = vmatmul.mubr.f32.gmra.mrb[0].mxu0 %v394
        %v396 = vpop.f32.mrb[0].mxu0
        %v397 = vadd.f32 %v316, %v396
        %v398 = vpop.f32.mrb[0].mxu0
        %399 = vdwg.mxu0
        %400 = vmatprep.subr.mxu0 0.0
        %v401 = vand.u32 %v230, 4294901760
        %v402 = vsub.f32 %v230, %v401
        %403 = vmatpush1.msra.mxu0 %v402
        %404 = vmatprep.subr.mxu0 0.0
        %v405 = vand.u32 %v231, 4294901760
        %v406 = vsub.f32 %v231, %v405
        %407 = vmatpush1.msra.mxu0 %v406
        %408 = vmatprep.subr.mxu0 0.0
        %409 = vmatpush1.msra.mxu0 0.0
        %410 = vmatprep.subr.mxu0 0.0
        %411 = vmatpush1.msra.mxu0 0.0
        %412 = vmatprep.subr.mxu0 0.0
        %413 = vmatpush1.msra.mxu0 0.0
        %414 = vmatprep.subr.mxu0 0.0
        %415 = vmatpush1.msra.mxu0 0.0
        %416 = vmatprep.subr.mxu0 0.0
        %417 = vmatpush1.msra.mxu0 0.0
        %418 = vmatprep.subr.mxu0 0.0
        %419 = vmatpush1.msra.mxu0 0.0
        %420 = vmatprep.subr.mxu0 0.0
        %421 = vmatpush1.msra.mxu0 0.0
        %422 = vmatprep.subr.mxu0 0.0
        %423 = vmatpush1.msra.mxu0 0.0
        %424 = vmatprep.subr.mxu0 0.0
        %425 = vmatpush1.msra.mxu0 0.0
        %426 = vmatprep.subr.mxu0 0.0
        %427 = vmatpush1.msra.mxu0 0.0
        %428 = vmatprep.subr.mxu0 0.0
        %429 = vmatpush1.msra.mxu0 0.0
        %430 = vmatprep.subr.mxu0 0.0
        %431 = vmatpush1.msra.mxu0 0.0
        %432 = vmatprep.subr.mxu0 0.0
        %433 = vmatpush1.msra.mxu0 0.0
        %434 = vmatprep.subr.mxu0 0.0
        %435 = vmatpush1.msra.mxu0 0.0
        %436 = vmatprep.subr.mxu0 0.0
        %437 = vmatpush1.msra.mxu0 0.0
        %438 = vmatprep.subr.mxu0 0.0
        %439 = vmatpush1.msra.mxu0 0.0
        %440 = vmatprep.subr.mxu0 0.0
        %441 = vmatpush1.msra.mxu0 0.0
        %442 = vmatprep.subr.mxu0 0.0
        %443 = vmatpush1.msra.mxu0 0.0
        %444 = vmatprep.subr.mxu0 0.0
        %445 = vmatpush1.msra.mxu0 0.0
        %446 = vmatprep.subr.mxu0 0.0
        %447 = vmatpush1.msra.mxu0 0.0
        %448 = vmatprep.subr.mxu0 0.0
        %449 = vmatpush1.msra.mxu0 0.0
        %450 = vmatprep.subr.mxu0 0.0
        %451 = vmatpush1.msra.mxu0 0.0
        %452 = vmatprep.subr.mxu0 0.0
        %453 = vmatpush1.msra.mxu0 0.0
        %454 = vmatprep.subr.mxu0 0.0
        %455 = vmatpush1.msra.mxu0 0.0
        %456 = vmatprep.subr.mxu0 0.0
        %457 = vmatpush1.msra.mxu0 0.0
        %458 = vmatprep.subr.mxu0 0.0
        %459 = vmatpush1.msra.mxu0 0.0
        %460 = vmatprep.subr.mxu0 0.0
        %461 = vmatpush1.msra.mxu0 0.0
        %462 = vmatprep.subr.mxu0 0.0
        %463 = vmatpush1.msra.mxu0 0.0
        %464 = vmatprep.subr.mxu0 0.0
        %465 = vmatpush1.msra.mxu0 0.0
        %466 = vmatprep.subr.mxu0 0.0
        %467 = vmatpush1.msra.mxu0 0.0
        %468 = vmatprep.mubr.f32.mxu0 0.0
        %v469 = vand.u32 %v240, 4294901760
        %v470 = vsub.f32 %v240, %v469
        %471 = vmatmul.mubr.f32.gmra.mrb[0].mxu0 %v470
        %v472 = vpop.f32.mrb[0].mxu0
        %v473 = vadd.f32 %v397, %v472
        %v474 = vpop.f32.mrb[0].mxu0
        %475 = vdwg.mxu0
        %476 = vmatprep.subr.mxu0 0.0
        %v477 = vand.u32 %v230, 4294901760
        %478 = vmatpush1.msra.mxu0 %v477
        %479 = vmatprep.subr.mxu0 0.0
        %v480 = vand.u32 %v231, 4294901760
        %481 = vmatpush1.msra.mxu0 %v480
        %482 = vmatprep.subr.mxu0 0.0
        %483 = vmatpush1.msra.mxu0 0.0
        %484 = vmatprep.subr.mxu0 0.0
        %485 = vmatpush1.msra.mxu0 0.0
        %486 = vmatprep.subr.mxu0 0.0
        %487 = vmatpush1.msra.mxu0 0.0
        %488 = vmatprep.subr.mxu0 0.0
        %489 = vmatpush1.msra.mxu0 0.0
        %490 = vmatprep.subr.mxu0 0.0
        %491 = vmatpush1.msra.mxu0 0.0
        %492 = vmatprep.subr.mxu0 0.0
        %493 = vmatpush1.msra.mxu0 0.0
        %494 = vmatprep.subr.mxu0 0.0
        %495 = vmatpush1.msra.mxu0 0.0
        %496 = vmatprep.subr.mxu0 0.0
        %497 = vmatpush1.msra.mxu0 0.0
        %498 = vmatprep.subr.mxu0 0.0
        %499 = vmatpush1.msra.mxu0 0.0
        %500 = vmatprep.subr.mxu0 0.0
        %501 = vmatpush1.msra.mxu0 0.0
        %502 = vmatprep.subr.mxu0 0.0
        %503 = vmatpush1.msra.mxu0 0.0
        %504 = vmatprep.subr.mxu0 0.0
        %505 = vmatpush1.msra.mxu0 0.0
        %506 = vmatprep.subr.mxu0 0.0
        %507 = vmatpush1.msra.mxu0 0.0
        %508 = vmatprep.subr.mxu0 0.0
        %509 = vmatpush1.msra.mxu0 0.0
        %510 = vmatprep.subr.mxu0 0.0
        %511 = vmatpush1.msra.mxu0 0.0
        %512 = vmatprep.subr.mxu0 0.0
        %513 = vmatpush1.msra.mxu0 0.0
        %514 = vmatprep.subr.mxu0 0.0
        %515 = vmatpush1.msra.mxu0 0.0
        %516 = vmatprep.subr.mxu0 0.0
        %517 = vmatpush1.msra.mxu0 0.0
        %518 = vmatprep.subr.mxu0 0.0
        %519 = vmatpush1.msra.mxu0 0.0
        %520 = vmatprep.subr.mxu0 0.0
        %521 = vmatpush1.msra.mxu0 0.0
        %522 = vmatprep.subr.mxu0 0.0
        %523 = vmatpush1.msra.mxu0 0.0
        %524 = vmatprep.subr.mxu0 0.0
        %525 = vmatpush1.msra.mxu0 0.0
        %526 = vmatprep.subr.mxu0 0.0
        %527 = vmatpush1.msra.mxu0 0.0
        %528 = vmatprep.subr.mxu0 0.0
        %529 = vmatpush1.msra.mxu0 0.0
        %530 = vmatprep.subr.mxu0 0.0
        %531 = vmatpush1.msra.mxu0 0.0
        %532 = vmatprep.subr.mxu0 0.0
        %533 = vmatpush1.msra.mxu0 0.0
        %534 = vmatprep.subr.mxu0 0.0
        %535 = vmatpush1.msra.mxu0 0.0
        %536 = vmatprep.subr.mxu0 0.0
        %537 = vmatpush1.msra.mxu0 0.0
        %538 = vmatprep.subr.mxu0 0.0
        %539 = vmatpush1.msra.mxu0 0.0
        %540 = vmatprep.subr.mxu0 0.0
        %541 = vmatpush1.msra.mxu0 0.0
        %542 = vmatprep.mubr.f32.mxu0 0.0
        %v543 = vand.u32 %v240, 4294901760
        %v544 = vsub.f32 %v240, %v543
        %v545 = vand.u32 %v544, 4294901760
        %546 = vmatmul.mubr.f32.gmra.mrb[0].mxu0 %v545
        %v547 = vpop.f32.mrb[0].mxu0
        %v548 = vadd.f32 %v473, %v547
        %v549 = vpop.f32.mrb[0].mxu0
        %550 = vdwg.mxu0
        %551 = vmatprep.subr.mxu0 0.0
        %v552 = vand.u32 %v230, 4294901760
        %v553 = vsub.f32 %v230, %v552
        %v554 = vand.u32 %v553, 4294901760
        %555 = vmatpush1.msra.mxu0 %v554
        %556 = vmatprep.subr.mxu0 0.0
        %v557 = vand.u32 %v231, 4294901760
        %v558 = vsub.f32 %v231, %v557
        %v559 = vand.u32 %v558, 4294901760
        %560 = vmatpush1.msra.mxu0 %v559
        %561 = vmatprep.subr.mxu0 0.0
        %562 = vmatpush1.msra.mxu0 0.0
        %563 = vmatprep.subr.mxu0 0.0
        %564 = vmatpush1.msra.mxu0 0.0
        %565 = vmatprep.subr.mxu0 0.0
        %566 = vmatpush1.msra.mxu0 0.0
        %567 = vmatprep.subr.mxu0 0.0
        %568 = vmatpush1.msra.mxu0 0.0
        %569 = vmatprep.subr.mxu0 0.0
        %570 = vmatpush1.msra.mxu0 0.0
        %571 = vmatprep.subr.mxu0 0.0
        %572 = vmatpush1.msra.mxu0 0.0
        %573 = vmatprep.subr.mxu0 0.0
        %574 = vmatpush1.msra.mxu0 0.0
        %575 = vmatprep.subr.mxu0 0.0
        %576 = vmatpush1.msra.mxu0 0.0
        %577 = vmatprep.subr.mxu0 0.0
        %578 = vmatpush1.msra.mxu0 0.0
        %579 = vmatprep.subr.mxu0 0.0
        %580 = vmatpush1.msra.mxu0 0.0
        %581 = vmatprep.subr.mxu0 0.0
        %582 = vmatpush1.msra.mxu0 0.0
        %583 = vmatprep.subr.mxu0 0.0
        %584 = vmatpush1.msra.mxu0 0.0
        %585 = vmatprep.subr.mxu0 0.0
        %586 = vmatpush1.msra.mxu0 0.0
        %587 = vmatprep.subr.mxu0 0.0
        %588 = vmatpush1.msra.mxu0 0.0
        %589 = vmatprep.subr.mxu0 0.0
        %590 = vmatpush1.msra.mxu0 0.0
        %591 = vmatprep.subr.mxu0 0.0
        %592 = vmatpush1.msra.mxu0 0.0
        %593 = vmatprep.subr.mxu0 0.0
        %594 = vmatpush1.msra.mxu0 0.0
        %595 = vmatprep.subr.mxu0 0.0
        %596 = vmatpush1.msra.mxu0 0.0
        %597 = vmatprep.subr.mxu0 0.0
        %598 = vmatpush1.msra.mxu0 0.0
        %599 = vmatprep.subr.mxu0 0.0
        %600 = vmatpush1.msra.mxu0 0.0
        %601 = vmatprep.subr.mxu0 0.0
        %602 = vmatpush1.msra.mxu0 0.0
        %603 = vmatprep.subr.mxu0 0.0
        %604 = vmatpush1.msra.mxu0 0.0
        %605 = vmatprep.subr.mxu0 0.0
        %606 = vmatpush1.msra.mxu0 0.0
        %607 = vmatprep.subr.mxu0 0.0
        %608 = vmatpush1.msra.mxu0 0.0
        %609 = vmatprep.subr.mxu0 0.0
        %610 = vmatpush1.msra.mxu0 0.0
        %611 = vmatprep.subr.mxu0 0.0
        %612 = vmatpush1.msra.mxu0 0.0
        %613 = vmatprep.subr.mxu0 0.0
        %614 = vmatpush1.msra.mxu0 0.0
        %615 = vmatprep.subr.mxu0 0.0
        %616 = vmatpush1.msra.mxu0 0.0
        %617 = vmatprep.subr.mxu0 0.0
        %618 = vmatpush1.msra.mxu0 0.0
        %619 = vmatprep.subr.mxu0 0.0
        %620 = vmatpush1.msra.mxu0 0.0
        %621 = vmatprep.mubr.f32.mxu0 0.0
        %v622 = vand.u32 %v240, 4294901760
        %623 = vmatmul.mubr.f32.gmra.mrb[0].mxu0 %v622
        %v624 = vpop.f32.mrb[0].mxu0
        %v625 = vadd.f32 %v548, %v624
        %v626 = vpop.f32.mrb[0].mxu0
        %627 = vdwg.mxu0
        %628 = vmatprep.subr.mxu0 0.0
        %v629 = vand.u32 %v230, 4294901760
        %630 = vmatpush1.msra.mxu0 %v629
        %631 = vmatprep.subr.mxu0 0.0
        %v632 = vand.u32 %v231, 4294901760
        %633 = vmatpush1.msra.mxu0 %v632
        %634 = vmatprep.subr.mxu0 0.0
        %635 = vmatpush1.msra.mxu0 0.0
        %636 = vmatprep.subr.mxu0 0.0
        %637 = vmatpush1.msra.mxu0 0.0
        %638 = vmatprep.subr.mxu0 0.0
        %639 = vmatpush1.msra.mxu0 0.0
        %640 = vmatprep.subr.mxu0 0.0
        %641 = vmatpush1.msra.mxu0 0.0
        %642 = vmatprep.subr.mxu0 0.0
        %643 = vmatpush1.msra.mxu0 0.0
        %644 = vmatprep.subr.mxu0 0.0
        %645 = vmatpush1.msra.mxu0 0.0
        %646 = vmatprep.subr.mxu0 0.0
        %647 = vmatpush1.msra.mxu0 0.0
        %648 = vmatprep.subr.mxu0 0.0
        %649 = vmatpush1.msra.mxu0 0.0
        %650 = vmatprep.subr.mxu0 0.0
        %651 = vmatpush1.msra.mxu0 0.0
        %652 = vmatprep.subr.mxu0 0.0
        %653 = vmatpush1.msra.mxu0 0.0
        %654 = vmatprep.subr.mxu0 0.0
        %655 = vmatpush1.msra.mxu0 0.0
        %656 = vmatprep.subr.mxu0 0.0
        %657 = vmatpush1.msra.mxu0 0.0
        %658 = vmatprep.subr.mxu0 0.0
        %659 = vmatpush1.msra.mxu0 0.0
        %660 = vmatprep.subr.mxu0 0.0
        %661 = vmatpush1.msra.mxu0 0.0
        %662 = vmatprep.subr.mxu0 0.0
        %663 = vmatpush1.msra.mxu0 0.0
        %664 = vmatprep.subr.mxu0 0.0
        %665 = vmatpush1.msra.mxu0 0.0
        %666 = vmatprep.subr.mxu0 0.0
        %667 = vmatpush1.msra.mxu0 0.0
        %668 = vmatprep.subr.mxu0 0.0
        %669 = vmatpush1.msra.mxu0 0.0
        %670 = vmatprep.subr.mxu0 0.0
        %671 = vmatpush1.msra.mxu0 0.0
        %672 = vmatprep.subr.mxu0 0.0
        %673 = vmatpush1.msra.mxu0 0.0
        %674 = vmatprep.subr.mxu0 0.0
        %675 = vmatpush1.msra.mxu0 0.0
        %676 = vmatprep.subr.mxu0 0.0
        %677 = vmatpush1.msra.mxu0 0.0
        %678 = vmatprep.subr.mxu0 0.0
        %679 = vmatpush1.msra.mxu0 0.0
        %680 = vmatprep.subr.mxu0 0.0
        %681 = vmatpush1.msra.mxu0 0.0
        %682 = vmatprep.subr.mxu0 0.0
        %683 = vmatpush1.msra.mxu0 0.0
        %684 = vmatprep.subr.mxu0 0.0
        %685 = vmatpush1.msra.mxu0 0.0
        %686 = vmatprep.subr.mxu0 0.0
        %687 = vmatpush1.msra.mxu0 0.0
        %688 = vmatprep.subr.mxu0 0.0
        %689 = vmatpush1.msra.mxu0 0.0
        %690 = vmatprep.subr.mxu0 0.0
        %691 = vmatpush1.msra.mxu0 0.0
        %692 = vmatprep.subr.mxu0 0.0
        %693 = vmatpush1.msra.mxu0 0.0
        %694 = vmatprep.mubr.f32.mxu0 0.0
        %v695 = vand.u32 %v240, 4294901760
        %696 = vmatmul.mubr.f32.gmra.mrb[0].mxu0 %v695
        %v697 = vpop.f32.mrb[0].mxu0
        %v698 = vadd.f32 %v625, %v697
        %v699 = vpop.f32.mrb[0].mxu0
        %700 = vdwg.mxu0
        %702 = vrot.lane.b32.xlu0 %v698, 113
        %v703 = vpop.permute.xlu0 %702
        %vm705 = vcmask 1024
        %706 = vst.msk [vmem:[#allocation3] sm:$0x3] %vm705, %v703
        %v707 = vlaneseq
        %v708 = vand.u32 %v707, 127
        %s709 = smul.u32 %s22, 16
        %s710 = sadd.s32 %s709, 1
        %v711 = vstv %s710
        %v712 = vadd.s32 %v708, %v711
        %v713 = vcvt.s32.f32 %v712
        %v714 = vmul.f32 %v713, 4.0
        %v715 = vrcp.pop %v714
        %v716 = vmul.f32 1.0, %v715
        %v717 = vmul.f32 %v698, %v716
        %v718 = vmul.f32 %v717, 2.0
        %v719 = vmul.f32 %v718, %v698
        %v721 = vrot.slane %v719, 7
        %v723 = vsub.f32 %v698, %v721
        %v724 = vmul.f32 %v723, %v716
        %v725 = vmul.f32 %v717, %v717
        %v727 = vrot.slane %v725, 7
        %v729 = vadd.f32 %v724, %v727
        %v730 = vadd.f32 %v729, 1e-08
        %v731 = vrsqrt.pop %v730
        %v732 = vld [vmem:[%s1] sm:$0xf]
        %v733 = vld [vmem:[%s2] sm:$0xf]
        %v734 = vlaneseq
        %v735 = vshrl.u32 %v734, 7
        %v736 = vsub.s32 0, %v735
        %v737 = vrot.slane %v717, %v736
        %v738 = vsub.f32 %v211, %v737
        %v739 = vlaneseq
        %v740 = vshrl.u32 %v739, 7
        %v741 = vsub.s32 1, %v740
        %v742 = vrot.slane %v731, %v741
        %v743 = vmul.f32 %v738, %v742
        %745 = vset.pattern.permute.xlu0 0
        %746 = vperm.xlu0 %745, %v732
        %v747 = vpop.permute.xlu0 %746
        %v749 = vmul.f32 %v743, %v747
        %751 = vset.pattern.permute.xlu0 0
        %752 = vperm.xlu0 %751, %v733
        %v753 = vpop.permute.xlu0 %752
        %v755 = vadd.f32 %v749, %v753
        %756 = vst.msk [vmem:[%s183] sm:$0xf] %vm212, %v755
        %s757 = sand.u32 %s109, 1
        %s758 = scalar_lea.sflag [#allocation5], %s757
        %s759 = sand.u32 %s109, 1
        %s760 = smul.addr %s759, 4
        %s761 = scalar_lea.vmem [#allocation4], %s760
        // Predicated region
        $region37: #{tpu_custom_call.1} parent=31 // pred_check
          %p762 = pneg %p119
        $region38: #{tpu_custom_call.1} parent=31 // pred_check_branch
          %764 = sbr.rel (%p762) target = $region40
        $region39: #{tpu_custom_call.1} parent=31 // pred_region
          %s766 = ssub.s32 64, 64
          %767 = vsyncadd %s758, %s766
          %s768 = sadd.s32 %s22, %s21
          %s769 = smul.addr %s768, 64
          %s770 = scalar_lea.hbm %s3, %s769
          %s772 = sshll.u32 %s761, 4
          %s773 = int_to_ptr.vmem [resolvable:$true] %s772
          %775 = dma.vmem_to_hbm [thread:$0]  %s773, 64, %s770, %s758
        $region40: #{tpu_custom_call.1} parent=31 // pred_fallthru
          _
      $region32: #{tpu_custom_call.1} parent=5 // pred_fallthru
        _
      %p776 = scmp.le.s32.totalorder 2, %s12
      // Predicated region
      $region41: #{tpu_custom_call.1} parent=5 // pred_check
        %p777 = pneg %p776
      $region42: #{tpu_custom_call.1} parent=5 // pred_check_branch
        %779 = sbr.rel (%p777) target = $region44
      $region43: #{tpu_custom_call.1} parent=5 // pred_region
        %s780 = ssub.s32 %s12, 2
        // Predicated region
        $region45: #{tpu_custom_call.1} parent=43 // pred_check
          %p781 = pneg %p125
        $region46: #{tpu_custom_call.1} parent=43 // pred_check_branch
          %783 = sbr.rel (%p781) target = $region48
        $region47: #{tpu_custom_call.1} parent=43 // pred_region
          %s784 = sand.u32 %s110, 1
          %s785 = scalar_lea.sflag [#allocation5], %s784
          %s786 = sand.u32 %s110, 1
          %s787 = smul.addr %s786, 4
          %s788 = scalar_lea.vmem [#allocation4], %s787
          %789 = dma.done %s785, 64
        $region48: #{tpu_custom_call.1} parent=43 // pred_fallthru
          _
      $region44: #{tpu_custom_call.1} parent=5 // pred_fallthru
        _
    $region6: #{tpu_custom_call.1} parent=1 // loop_footer
      %s16 = sadd.s32 1, %s12
    $region7: #{tpu_custom_call.1} parent=1 // loop_footer_branch
      %11 = sbr.rel target = $region3
    $region8: #{tpu_custom_call.1} parent=1 // loop_exit
      _
    %790 = vsyncpa [#allocation5], 1
    %s791 = scalar_lea.sflag [#allocation5], 1
    %792 = vsyncpa %s791, 1

</llo_original>
